<compile_context>
chip_gen: v5e
topology: v5e:2x2
jax: 0.10.0
libtpu: 0.0.40
codegen_flags: <defaults>
</compile_context>

<pallas_src>
import math

import jax
import jax.numpy as jnp
from jax.experimental import pallas as pl
from jax.experimental.pallas import tpu as pltpu

H1, H2 = 40, 30  # hidden sizes fixed by the PyTorch module


def dnn_kernel(x_ref, w1_ref, b1_ref, w2_ref, b2_ref, w3_ref, b3_ref, o_ref):
    # One batch tile: 3x (matmul + bias + ReLU), final sigmoid.  f32 accumulation.
    h = jnp.dot(x_ref[...], w1_ref[...], preferred_element_type=jnp.float32)
    h = jnp.maximum(h + b1_ref[...], 0.0)
    h = jnp.dot(h.astype(w2_ref.dtype), w2_ref[...], preferred_element_type=jnp.float32)
    h = jnp.maximum(h + b2_ref[...], 0.0)
    h = jnp.dot(h.astype(w3_ref.dtype), w3_ref[...], preferred_element_type=jnp.float32)
    h = jnp.maximum(h + b3_ref[...], 0.0)          # PyTorch applies ReLU to fc3 too
    o_ref[...] = jax.nn.sigmoid(h).astype(o_ref.dtype)


def _round_up(x, m):
    return (x + m - 1) // m * m


def _choose_pack(batch, in_dim, out_dim, max_weight_bytes=8 << 20):
    """Samples packed per row; lane-dense output (pack*out_dim == 128) when possible."""
    if 128 % out_dim != 0:
        return 1
    pack = 128 // out_dim
    pack = math.gcd(pack, batch)  # must divide B so the x/out reshapes are free views
    weight_elems = in_dim * H1 + H1 * H2 + H2 * out_dim
    while pack > 1 and pack * pack * weight_elems * 4 > max_weight_bytes:
        pack //= 2
    return max(pack, 1)


def _block_diag(w, pack):
    # (fin, fout) -> (pack*fin, pack*fout) with copies of w on the diagonal.
    return jnp.kron(jnp.eye(pack, dtype=w.dtype), w)


def dnn_forward(x, params, *, block_samples=8192, core_parallel=False):
    """Forward pass matching DNN.forward (x: (B, input_dim) f32).

    block_samples: samples per grid step.  Large tiles amortize per-step grid
      overhead (this tiny-MLP kernel is overhead-bound at small tiles, not
      HBM-bandwidth bound).
    core_parallel: set True on multi-TensorCore chips (v7x) to shard the batch
      grid axis across cores; the portable default keeps "parallel".
    """
    w1, b1, w2, b2, w3, b3 = params
    B, in_dim = x.shape
    out_dim = w3.shape[1]

    # --- sample packing: fold `pack` samples per row, block-diagonal weights.
    pack = _choose_pack(B, in_dim, out_dim)
    if pack > 1:
        # TODO(synk): in production, pre-pack the block-diagonal weights once
        # outside the step function instead of rebuilding them per call.
        w1, w2, w3 = (_block_diag(w, pack) for w in (w1, w2, w3))
        b1, b2, b3 = (jnp.tile(b, (1, pack)) for b in (b1, b2, b3))
        x = x.reshape(B // pack, pack * in_dim)        # free row-major view
    Bp, pin = x.shape
    pout = pack * out_dim

    # --- batch tiling: one big tile if it fits, else fixed tiles + masked tail.
    tbp = max(8, min(_round_up(Bp, 8),
                     _round_up(max(block_samples // pack, 1), 8)))
    n_steps = (Bp + tbp - 1) // tbp

    # --- VMEM budget: double-buffered x/out blocks + two f32 intermediates +
    #     resident weights, 2x headroom, capped for v7x's 64 MiB physical VMEM.
    def _padded(r, c):
        return _round_up(r, 8) * _round_up(c, 128) * 4

    weight_bytes = sum(_padded(*a.shape) for a in (w1, b1, w2, b2, w3, b3))
    est = (2 * _padded(tbp, pin) + 2 * _padded(tbp, pout)
           + _padded(tbp, pack * H1) + _padded(tbp, pack * H2) + weight_bytes)
    vmem_limit = int(min(56 * 2**20, max(32 * 2**20, 2 * est)))

    x_spec = pl.BlockSpec((tbp, pin), lambda i: (i, 0))
    out_spec = pl.BlockSpec((tbp, pout), lambda i: (i, 0))

    def const_spec(a):
        # Full-array block, constant block index -> fetched once, resident in VMEM.
        return pl.BlockSpec(a.shape, lambda i: (0, 0))

    flops = 2 * Bp * (pin * pack * H1 + pack * H1 * pack * H2 + pack * H2 * pout)
    bytes_accessed = (x.size * x.dtype.itemsize + Bp * pout * 4
                      + sum(int(a.size) * a.dtype.itemsize
                            for a in (w1, b1, w2, b2, w3, b3)))

    semantics = (pltpu.CORE_PARALLEL,) if core_parallel else ("parallel",)

    out = pl.pallas_call(
        dnn_kernel,
        out_shape=jax.ShapeDtypeStruct((Bp, pout), jnp.float32),
        grid=(n_steps,),
        in_specs=[x_spec] + [const_spec(a) for a in (w1, b1, w2, b2, w3, b3)],
        out_specs=out_spec,
        compiler_params=pltpu.CompilerParams(
            dimension_semantics=semantics,
            vmem_limit_bytes=vmem_limit,
        ),
        cost_estimate=pl.CostEstimate(
            flops=flops,
            transcendentals=B * out_dim,
            bytes_accessed=bytes_accessed,
        ),
    )(x, w1, b1, w2, b2, w3, b3)

    return out.reshape(B, out_dim)                    # free row-major view back


def init_params(key, input_dim, output_dim):
    """PyTorch nn.Linear-style init U[-1/sqrt(fan_in), +1/sqrt(fan_in)]; weights stored (in, out)."""
    dims = [(input_dim, H1), (H1, H2), (H2, output_dim)]
    params = []
    for fan_in, fan_out in dims:
        key, kw, kb = jax.random.split(key, 3)
        bound = 1.0 / math.sqrt(fan_in)
        params.append(jax.random.uniform(kw, (fan_in, fan_out), jnp.float32, -bound, bound))
        params.append(jax.random.uniform(kb, (1, fan_out), jnp.float32, -bound, bound))
    return tuple(params)


def reference_forward(x, params):
    w1, b1, w2, b2, w3, b3 = params
    hp = jax.lax.Precision.HIGHEST   # keep the reference in true f32 on TPU
    h = jnp.maximum(jnp.dot(x, w1, precision=hp) + b1, 0.0)
    h = jnp.maximum(jnp.dot(h, w2, precision=hp) + b2, 0.0)
    h = jnp.maximum(jnp.dot(h, w3, precision=hp) + b3, 0.0)
    return jax.nn.sigmoid(h)


if __name__ == "__main__":
    key = jax.random.PRNGKey(0)
    kp, kx1, kx2 = jax.random.split(key, 3)

    input_dim, output_dim = 16, 8
    params = init_params(kp, input_dim, output_dim)

    # Small case (batch=2): pack collapses to gcd(16, 2)=2, single padded grid step.
    x_small = jax.random.normal(kx1, (2, input_dim), jnp.float32)
    out_small = jax.block_until_ready(dnn_forward(x_small, params))
    ref_small = reference_forward(x_small, params)
    assert out_small.shape == (2, output_dim)
    # Tolerance covers MXU f32 pass decomposition vs XLA reference accumulation.
    assert jnp.allclose(out_small, ref_small, atol=2e-3), "mismatch vs reference (small)"

    # Larger case: 16-way lane-dense packing, multi-step grid (tbp=16, 4 steps)
    # with a masked partial trailing block (62 packed rows, last block 14/16 valid).
    big_b = 992
    x_big = jax.random.normal(kx2, (big_b, input_dim), jnp.float32)
    out_big = jax.block_until_ready(dnn_forward(x_big, params, block_samples=256))
    ref_big = reference_forward(x_big, params)
    assert out_big.shape == (big_b, output_dim)
    assert jnp.allclose(out_big, ref_big, atol=2e-3), "mismatch vs reference (large)"

    print("KERNEL_OK")
</pallas_src>

<mosaic_0001>
module attributes {stable_mosaic.version = 11 : i64} {
  func.func @dnn_kernel(%arg0: i32, %arg1: memref<8x32xf32, #tpu.memory_space<vmem>>, %arg2: memref<32x80xf32, #tpu.memory_space<vmem>>, %arg3: memref<1x80xf32, #tpu.memory_space<vmem>>, %arg4: memref<80x60xf32, #tpu.memory_space<vmem>>, %arg5: memref<1x60xf32, #tpu.memory_space<vmem>>, %arg6: memref<60x16xf32, #tpu.memory_space<vmem>>, %arg7: memref<1x16xf32, #tpu.memory_space<vmem>>, %arg8: memref<8x16xf32, #tpu.memory_space<vmem>>) attributes {dimension_semantics = [#tpu.dimension_semantics<parallel>], iteration_bounds = array<i64: 1>, scalar_prefetch = 0 : i64, scratch_operands = 0 : i64, tpu.core_type = #tpu.core_type<tc>, window_params = [{transform_indices = @transform_0, window_bounds = array<i64: 8, 32>}, {pipeline_mode = #tpu.pipeline_mode<synchronous>, transform_indices = @transform_1, window_bounds = array<i64: 32, 80>}, {pipeline_mode = #tpu.pipeline_mode<synchronous>, transform_indices = @transform_2, window_bounds = array<i64: 1, 80>}, {pipeline_mode = #tpu.pipeline_mode<synchronous>, transform_indices = @transform_3, window_bounds = array<i64: 80, 60>}, {pipeline_mode = #tpu.pipeline_mode<synchronous>, transform_indices = @transform_4, window_bounds = array<i64: 1, 60>}, {pipeline_mode = #tpu.pipeline_mode<synchronous>, transform_indices = @transform_5, window_bounds = array<i64: 60, 16>}, {pipeline_mode = #tpu.pipeline_mode<synchronous>, transform_indices = @transform_6, window_bounds = array<i64: 1, 16>}, {transform_indices = @transform_7, window_bounds = array<i64: 8, 16>}]} {
    %c0 = arith.constant 0 : index
    %c0_0 = arith.constant 0 : index
    %0 = vector.load %arg1[%c0, %c0_0] : memref<8x32xf32, #tpu.memory_space<vmem>>, vector<8x32xf32>
    %c0_1 = arith.constant 0 : index
    %c0_2 = arith.constant 0 : index
    %1 = vector.load %arg2[%c0_1, %c0_2] : memref<32x80xf32, #tpu.memory_space<vmem>>, vector<32x80xf32>
    %cst = arith.constant dense<0.000000e+00> : vector<8x80xf32>
    %2 = tpu.matmul %0, %1, %cst {dimension_numbers = #tpu.dot_dimension_numbers<[1], [0], [0], [1], [0, 0, 1, 1], [], []>} : vector<8x32xf32>, vector<32x80xf32>, vector<8x80xf32> -> vector<8x80xf32>
    %c0_3 = arith.constant 0 : index
    %c0_4 = arith.constant 0 : index
    %3 = vector.load %arg3[%c0_3, %c0_4] : memref<1x80xf32, #tpu.memory_space<vmem>>, vector<1x80xf32>
    %4 = vector.broadcast %3 : vector<1x80xf32> to vector<8x80xf32>
    %5 = arith.addf %2, %4 : vector<8x80xf32>
    %cst_5 = arith.constant 0.000000e+00 : f32
    %6 = vector.broadcast %cst_5 : f32 to vector<8x80xf32>
    %7 = arith.maximumf %5, %6 : vector<8x80xf32>
    %c0_6 = arith.constant 0 : index
    %c0_7 = arith.constant 0 : index
    %8 = vector.load %arg4[%c0_6, %c0_7] : memref<80x60xf32, #tpu.memory_space<vmem>>, vector<80x60xf32>
    %cst_8 = arith.constant dense<0.000000e+00> : vector<8x60xf32>
    %9 = tpu.matmul %7, %8, %cst_8 {dimension_numbers = #tpu.dot_dimension_numbers<[1], [0], [0], [1], [0, 0, 1, 1], [], []>} : vector<8x80xf32>, vector<80x60xf32>, vector<8x60xf32> -> vector<8x60xf32>
    %c0_9 = arith.constant 0 : index
    %c0_10 = arith.constant 0 : index
    %10 = vector.load %arg5[%c0_9, %c0_10] : memref<1x60xf32, #tpu.memory_space<vmem>>, vector<1x60xf32>
    %11 = vector.broadcast %10 : vector<1x60xf32> to vector<8x60xf32>
    %12 = arith.addf %9, %11 : vector<8x60xf32>
    %cst_11 = arith.constant 0.000000e+00 : f32
    %13 = vector.broadcast %cst_11 : f32 to vector<8x60xf32>
    %14 = arith.maximumf %12, %13 : vector<8x60xf32>
    %c0_12 = arith.constant 0 : index
    %c0_13 = arith.constant 0 : index
    %15 = vector.load %arg6[%c0_12, %c0_13] : memref<60x16xf32, #tpu.memory_space<vmem>>, vector<60x16xf32>
    %cst_14 = arith.constant dense<0.000000e+00> : vector<8x16xf32>
    %16 = tpu.matmul %14, %15, %cst_14 {dimension_numbers = #tpu.dot_dimension_numbers<[1], [0], [0], [1], [0, 0, 1, 1], [], []>} : vector<8x60xf32>, vector<60x16xf32>, vector<8x16xf32> -> vector<8x16xf32>
    %c0_15 = arith.constant 0 : index
    %c0_16 = arith.constant 0 : index
    %17 = vector.load %arg7[%c0_15, %c0_16] : memref<1x16xf32, #tpu.memory_space<vmem>>, vector<1x16xf32>
    %18 = vector.broadcast %17 : vector<1x16xf32> to vector<8x16xf32>
    %19 = arith.addf %16, %18 : vector<8x16xf32>
    %cst_17 = arith.constant 0.000000e+00 : f32
    %20 = vector.broadcast %cst_17 : f32 to vector<8x16xf32>
    %21 = arith.maximumf %19, %20 : vector<8x16xf32>
    %22 = arith.negf %21 : vector<8x16xf32>
    %23 = math.exp %22 : vector<8x16xf32>
    %cst_18 = arith.constant 1.000000e+00 : f32
    %24 = vector.broadcast %cst_18 : f32 to vector<8x16xf32>
    %25 = arith.addf %24, %23 : vector<8x16xf32>
    %26 = arith.divf %24, %25 : vector<8x16xf32>
    %c0_19 = arith.constant 0 : index
    %c0_20 = arith.constant 0 : index
    %27 = vector.load %arg8[%c0_19, %c0_20] : memref<8x16xf32, #tpu.memory_space<vmem>>, vector<8x16xf32>
    tpu.vector_store %arg8[%c0_19, %c0_20], %26 {strides = array<i32>} : memref<8x16xf32, #tpu.memory_space<vmem>>, vector<8x16xf32>,
    return
  }
  func.func @transform_0(%arg0: i32) -> (i32, i32) {
    %c0_i32 = arith.constant 0 : i32
    %c0_i32_0 = arith.constant 0 : i32
    return %arg0, %c0_i32 : i32, i32
  }
  func.func @transform_1(%arg0: i32) -> (i32, i32) {
    %c0_i32 = arith.constant 0 : i32
    %c0_i32_0 = arith.constant 0 : i32
    %c0_i32_1 = arith.constant 0 : i32
    return %c0_i32, %c0_i32_0 : i32, i32
  }
  func.func @transform_2(%arg0: i32) -> (i32, i32) {
    %c0_i32 = arith.constant 0 : i32
    %c0_i32_0 = arith.constant 0 : i32
    %c0_i32_1 = arith.constant 0 : i32
    return %c0_i32, %c0_i32_0 : i32, i32
  }
  func.func @transform_3(%arg0: i32) -> (i32, i32) {
    %c0_i32 = arith.constant 0 : i32
    %c0_i32_0 = arith.constant 0 : i32
    %c0_i32_1 = arith.constant 0 : i32
    return %c0_i32, %c0_i32_0 : i32, i32
  }
  func.func @transform_4(%arg0: i32) -> (i32, i32) {
    %c0_i32 = arith.constant 0 : i32
    %c0_i32_0 = arith.constant 0 : i32
    %c0_i32_1 = arith.constant 0 : i32
    return %c0_i32, %c0_i32_0 : i32, i32
  }
  func.func @transform_5(%arg0: i32) -> (i32, i32) {
    %c0_i32 = arith.constant 0 : i32
    %c0_i32_0 = arith.constant 0 : i32
    %c0_i32_1 = arith.constant 0 : i32
    return %c0_i32, %c0_i32_0 : i32, i32
  }
  func.func @transform_6(%arg0: i32) -> (i32, i32) {
    %c0_i32 = arith.constant 0 : i32
    %c0_i32_0 = arith.constant 0 : i32
    %c0_i32_1 = arith.constant 0 : i32
    return %c0_i32, %c0_i32_0 : i32, i32
  }
  func.func @transform_7(%arg0: i32) -> (i32, i32) {
    %c0_i32 = arith.constant 0 : i32
    %c0_i32_0 = arith.constant 0 : i32
    return %arg0, %c0_i32 : i32, i32
  }
}

</mosaic_0001>

<llo_original>
// kernel: tpu_custom_call.1
$region0: #{tpu_custom_call.1}
  #allocation0 [shape = 'u32[]', space=smem, size = 0x4, offset = 0x4, fixed_abs, tag = 'smem constant byte address 0x4 - core index']
  #allocation1 [shape = 'u32[72,128]{1,0:T(1,128)}', space=vmem, size = 0x9000, scoped, tag = 'internal scratch']
  %s0 = inlined_call_operand.vmem [shape: f32[1,32], index: 0, kind: input, shape index: {}]
  %s1 = inlined_call_operand.vmem [shape: f32[32,80], index: 1, kind: input, shape index: {}]
  %s2 = inlined_call_operand.vmem [shape: f32[1,80], index: 2, kind: input, shape index: {}]
  %s3 = inlined_call_operand.vmem [shape: f32[80,60], index: 3, kind: input, shape index: {}]
  %s4 = inlined_call_operand.vmem [shape: f32[1,60], index: 4, kind: input, shape index: {}]
  %s5 = inlined_call_operand.vmem [shape: f32[60,16], index: 5, kind: input, shape index: {}]
  %s6 = inlined_call_operand.vmem [shape: f32[1,16], index: 6, kind: input, shape index: {}]
  %s7 = inlined_call_operand.hbm [shape: f32[1,16], index: 7, kind: output, shape index: {}]
  %s8 = sld [smem:[#allocation0]]
  $region38: #{tpu_custom_call.1} parent=0
    _
  %s10 = ssub.s32 1, %s8
  %s11 = scalar_select 0, %s10, %s8
  $region1: #{tpu_custom_call.1} parent=0
    #allocation2 [shape = 'u8[4096]{0}', space=vmem, size = 0x1000, scoped, tag = 'output window, operand 0, single buffered']
    #allocation3 [shape = 's32[1]{0}', space=sflag, size = 0x4, scoped, tag = 'scoped memory for tpu_custom_call.1']
    %12 = vsyncpa [#allocation3], 0
    // Predicated region
    $region2: #{tpu_custom_call.1} parent=1 // pred_check
      _
    $region3: #{tpu_custom_call.1} parent=1 // pred_check_branch
      %14 = sbr.rel (0) target = $region5
    $region4: #{tpu_custom_call.1} parent=1 // pred_region
      _
    $region5: #{tpu_custom_call.1} parent=1 // pred_fallthru
      _
    // Predicated region
    $region6: #{tpu_custom_call.1} parent=1 // pred_check
      _
    $region7: #{tpu_custom_call.1} parent=1 // pred_check_branch
      %16 = sbr.rel (0) target = $region9
    $region8: #{tpu_custom_call.1} parent=1 // pred_region
      _
    $region9: #{tpu_custom_call.1} parent=1 // pred_fallthru
      _
    // Predicated region
    $region10: #{tpu_custom_call.1} parent=1 // pred_check
      _
    $region11: #{tpu_custom_call.1} parent=1 // pred_check_branch
      %18 = sbr.rel (0) target = $region13
    $region12: #{tpu_custom_call.1} parent=1 // pred_region
      _
    $region13: #{tpu_custom_call.1} parent=1 // pred_fallthru
      _
    // Predicated region
    $region14: #{tpu_custom_call.1} parent=1 // pred_check
      _
    $region15: #{tpu_custom_call.1} parent=1 // pred_check_branch
      %20 = sbr.rel (0) target = $region17
    $region16: #{tpu_custom_call.1} parent=1 // pred_region
      _
    $region17: #{tpu_custom_call.1} parent=1 // pred_fallthru
      _
    // Predicated region
    $region18: #{tpu_custom_call.1} parent=1 // pred_check
      _
    $region19: #{tpu_custom_call.1} parent=1 // pred_check_branch
      %22 = sbr.rel (0) target = $region21
    $region20: #{tpu_custom_call.1} parent=1 // pred_region
      _
    $region21: #{tpu_custom_call.1} parent=1 // pred_fallthru
      _
    // Predicated region
    $region22: #{tpu_custom_call.1} parent=1 // pred_check
      _
    $region23: #{tpu_custom_call.1} parent=1 // pred_check_branch
      %24 = sbr.rel (0) target = $region25
    $region24: #{tpu_custom_call.1} parent=1 // pred_region
      _
    $region25: #{tpu_custom_call.1} parent=1 // pred_fallthru
      _
    // Predicated region
    $region26: #{tpu_custom_call.1} parent=1 // pred_check
      _
    $region27: #{tpu_custom_call.1} parent=1 // pred_check_branch
      %26 = sbr.rel (0) target = $region29
    $region28: #{tpu_custom_call.1} parent=1 // pred_region
      _
    $region29: #{tpu_custom_call.1} parent=1 // pred_fallthru
      _
    %v27 = vld [vmem:[%s0] sm:$0xff]
    %v28 = vld [vmem:[%s1] sm:$0xff]
    %v29 = vld [vmem:[%s1 + $0x8] sm:$0xff]
    %v30 = vld [vmem:[%s1 + $0x10] sm:$0xff]
    %v31 = vld [vmem:[%s1 + $0x18] sm:$0xff]
    %v32 = vld [vmem:[%s2] sm:$0x1]
    %v34 = vperm.slane %v32, 0
    %vm36 = vcmask 261120
    %v38 = vsel %vm36, %v27, 0
    %40 = vmatpush.msra.mxu0 0.0
    %41 = vmatpush.msra.mxu0 0.0
    %42 = vmatpush.msra.mxu0 0.0
    %43 = vmatpush.msra.mxu0 0.0
    %44 = vmatpush.msra.mxu0 0.0
    %45 = vmatpush.msra.mxu0 0.0
    %46 = vmatpush.msra.mxu0 0.0
    %47 = vmatpush.msra.mxu0 0.0
    %48 = vmatpush.msra.mxu0 0.0
    %49 = vmatpush.msra.mxu0 0.0
    %50 = vmatpush.msra.mxu0 0.0
    %51 = vmatpush.msra.mxu0 0.0
    %52 = vmatpush.msra.mxu0 %v31
    %53 = vmatpush.msra.mxu0 %v30
    %54 = vmatpush.msra.mxu0 %v29
    %55 = vmatpush.msra.mxu0 %v28
    %56 = vmatmul.f32.gmra.mxu0 %v38
    %v57 = vpop.f32.mrf.mxu0
    %v58 = vadd.f32 %v34, %v57
    %59 = vdwg.mxu0
    %v60 = vmax.f32 %v58, 0.0
    %v61 = vld [vmem:[%s3] sm:$0xff]
    %v62 = vld [vmem:[%s3 + $0x8] sm:$0xff]
    %v63 = vld [vmem:[%s3 + $0x10] sm:$0xff]
    %v64 = vld [vmem:[%s3 + $0x18] sm:$0xff]
    %v65 = vld [vmem:[%s3 + $0x20] sm:$0xff]
    %v66 = vld [vmem:[%s3 + $0x28] sm:$0xff]
    %v67 = vld [vmem:[%s3 + $0x30] sm:$0xff]
    %v68 = vld [vmem:[%s3 + $0x38] sm:$0xff]
    %v69 = vld [vmem:[%s3 + $0x40] sm:$0xff]
    %v70 = vld [vmem:[%s3 + $0x48] sm:$0xff]
    %v71 = vld [vmem:[%s4] sm:$0x1]
    %v73 = vperm.slane %v71, 0
    %vm75 = vcmask 654336
    %v77 = vsel %vm75, %v60, 0
    %79 = vmatpush.msra.mxu0 0.0
    %80 = vmatpush.msra.mxu0 0.0
    %81 = vmatpush.msra.mxu0 0.0
    %82 = vmatpush.msra.mxu0 0.0
    %83 = vmatpush.msra.mxu0 0.0
    %84 = vmatpush.msra.mxu0 0.0
    %85 = vmatpush.msra.mxu0 %v70
    %86 = vmatpush.msra.mxu0 %v69
    %87 = vmatpush.msra.mxu0 %v68
    %88 = vmatpush.msra.mxu0 %v67
    %89 = vmatpush.msra.mxu0 %v66
    %90 = vmatpush.msra.mxu0 %v65
    %91 = vmatpush.msra.mxu0 %v64
    %92 = vmatpush.msra.mxu0 %v63
    %93 = vmatpush.msra.mxu0 %v62
    %94 = vmatpush.msra.mxu0 %v61
    %95 = vmatmul.f32.gmra.mxu0 %v77
    %v96 = vpop.f32.mrf.mxu0
    %v97 = vadd.f32 %v73, %v96
    %98 = vdwg.mxu0
    %v99 = vmax.f32 %v97, 0.0
    %v100 = vld [vmem:[%s5] sm:$0xff]
    %v101 = vld [vmem:[%s5 + $0x8] sm:$0xff]
    %v102 = vld [vmem:[%s5 + $0x10] sm:$0xff]
    %v103 = vld [vmem:[%s5 + $0x18] sm:$0xff]
    %v104 = vld [vmem:[%s5 + $0x20] sm:$0xff]
    %v105 = vld [vmem:[%s5 + $0x28] sm:$0xff]
    %v106 = vld [vmem:[%s5 + $0x30] sm:$0xff]
    %v107 = vld [vmem:[%s5 + $0x38] sm:$0xf]
    %v108 = vld [vmem:[%s6] sm:$0x1]
    %v110 = vperm.slane %v108, 0
    %vm112 = vcmask 490496
    %v114 = vsel %vm112, %v99, 0
    %vm116 = vcmask 1043456
    %v118 = vsel %vm116, %v107, 0
    %120 = vmatpush.msra.mxu0 0.0
    %121 = vmatpush.msra.mxu0 0.0
    %122 = vmatpush.msra.mxu0 0.0
    %123 = vmatpush.msra.mxu0 0.0
    %124 = vmatpush.msra.mxu0 0.0
    %125 = vmatpush.msra.mxu0 0.0
    %126 = vmatpush.msra.mxu0 0.0
    %127 = vmatpush.msra.mxu0 0.0
    %128 = vmatpush.msra.mxu0 %v118
    %129 = vmatpush.msra.mxu0 %v106
    %130 = vmatpush.msra.mxu0 %v105
    %131 = vmatpush.msra.mxu0 %v104
    %132 = vmatpush.msra.mxu0 %v103
    %133 = vmatpush.msra.mxu0 %v102
    %134 = vmatpush.msra.mxu0 %v101
    %135 = vmatpush.msra.mxu0 %v100
    %136 = vmatmul.f32.gmra.mxu0 %v114
    %v137 = vpop.f32.mrf.mxu0
    %v138 = vadd.f32 %v110, %v137
    %139 = vdwg.mxu0
    %v140 = vmax.f32 %v138, 0.0
    %v141 = vxor.u32 %v140, 2147483648
    %v142 = vmul.f32 %v141, 1.442695
    %v143 = vpow.pop %v142
    %v144 = vadd.f32 %v143, 1.0
    %v145 = vrcp.pop %v144
    %v146 = vmul.f32 %v144, %v145
    %v147 = vsub.f32 1.0, %v146
    %v148 = vmul.f32 %v145, %v147
    %v149 = vadd.f32 %v145, %v148
    %vm150 = vweird.f32 %v144
    %vm151 = vweird.f32 %v145
    %vm152 = vmor %vm150, %vm151
    %v153 = vsel %vm152, %v145, %v149
    %v154 = vand.u32 2147483647, %v144
    %vm155 = vcmp.eq.f32.partialorder %v154, 8.507059e+37
    %v156 = vand.u32 %v144, 2147483648
    %v157 = vor.u32 1.1754944e-38, %v156
    %v158 = vsel %vm155, %v157, %v153
    %v159 = vmul.f32 1.0, %v158
    %vm160 = vcmask 130048
    %161 = vst.msk [vmem:[#allocation2] sm:$0xff] %vm160, %v159
    // Predicated region
    $region30: #{tpu_custom_call.1} parent=1 // pred_check
      _
    $region31: #{tpu_custom_call.1} parent=1 // pred_check_branch
      %163 = sbr.rel (0) target = $region33
    $region32: #{tpu_custom_call.1} parent=1 // pred_region
      %165 = vsyncadd [#allocation3], 112
      %s166 = sshll.u32 [#allocation2], 4
      %s167 = int_to_ptr.vmem [resolvable:$true] %s166
      %s168 = sshll.u32 %s7, 4
      %s169 = int_to_ptr.hbm [resolvable:$true] %s168
      %174 = dma.vmem_to_hbm [thread:$0]  %s167, 16, %s169, [#allocation3], 16, 16, 1
    $region33: #{tpu_custom_call.1} parent=1 // pred_fallthru
      _
    // Predicated region
    $region34: #{tpu_custom_call.1} parent=1 // pred_check
      _
    $region35: #{tpu_custom_call.1} parent=1 // pred_check_branch
      %176 = sbr.rel (0) target = $region37
    $region36: #{tpu_custom_call.1} parent=1 // pred_region
      %178 = dma.done [#allocation3], 128
    $region37: #{tpu_custom_call.1} parent=1 // pred_fallthru
      _
    %179 = vsyncpa [#allocation3], 1

</llo_original>
